<compile_context>
chip_gen: v7x
topology: tpu7x:2x2x1
jax: 0.10.0
libtpu: 0.0.40
codegen_flags: <defaults>
</compile_context>

<pallas_src>
import functools
import math

import jax
import jax.numpy as jnp
from jax import lax
from jax.experimental import pallas as pl
from jax.experimental.pallas import tpu as pltpu


def _lin_eq_2to2_kernel(x_ref, xt_ref, v_ref, e_ref, wid_ref, wt_ref, wg_ref,
                        o_ref, *, out_features):
    # x_ref/xt_ref: (tb, C, N*N) model dtype    v_ref: (tb, K, N) f32
    # e_ref: (3N, N*N) f32                      wid/wt: (O, C)    wg: (3O, K)
    # o_ref: (tb, O, N*N)
    f32 = jnp.float32
    O = out_features
    tb = x_ref.shape[0]
    cd = x_ref.dtype                      # compute dtype of the big matmuls (bf16 stays bf16)

    # Loop-invariant loads: constant-index BlockSpecs mean these blocks are DMA'd only once
    # across the whole grid, and the loads are hoisted out of the per-batch loop.
    wid = wid_ref[...].astype(cd)         # (O, C)   op10 (identity) weights
    wt = wt_ref[...].astype(cd)           # (O, C)   op11 (transpose) weights
    wg = wg_ref[...]                      # (3O, K)  f32, [W_ri ; W_rj ; W_di]
    e = e_ref[...]                        # (3N, NN) f32, 0/1 selection matrix

    def body(b, carry):
        xb = x_ref[b]                                          # (C, NN)
        xtb = xt_ref[b]                                        # (C, NN)  x^T, flattened
        vb = v_ref[b]                                          # (K, N)   f32 reductions
        # full-matrix terms (ops 10, 11): two MXU pushes, f32 accumulation
        y = jnp.dot(wid, xb, preferred_element_type=f32)       # (O, NN)
        y = y + jnp.dot(wt, xtb, preferred_element_type=f32)
        # broadcast + diagonal terms: g = [Ri | Rj | Di], then one small MXU push against E
        g = jnp.dot(wg, vb, preferred_element_type=f32)        # (3O, N)
        g_cat = jnp.concatenate([g[:O], g[O:2 * O], g[2 * O:]], axis=1)   # (O, 3N)
        y = y + jnp.dot(g_cat, e, preferred_element_type=f32)
        o_ref[b] = y.astype(o_ref.dtype)                       # lane-dense (NN-wide) store
        return carry

    lax.fori_loop(0, tb, body, None)


def _pick_batch_block(B, per_batch_bytes, budget_bytes):
    """Largest divisor of B whose double-buffered streaming blocks fit the budget.

    Mild preference for >=4 grid steps (2 per TensorCore when the single 'parallel' axis is
    split across the v7x megacore) and >=2 steps (pipeline overlap), as long as that costs at
    most a 2x smaller block.
    """
    cap = max(1, min(B, budget_bytes // max(1, 2 * per_batch_bytes)))
    divisors = [d for d in range(1, B + 1) if B % d == 0]
    fit = [d for d in divisors if d <= cap] or [1]
    tb = max(fit)
    for want in (4, 2):
        better = [d for d in fit if B // d >= want and 2 * d >= tb]
        if better:
            tb = max(better)
            break
    return tb


def _vmem_limit_bytes(tb, per_batch_bytes, resident_bytes):
    est = 2 * tb * per_batch_bytes + resident_bytes
    # 25% + 4 MiB headroom for compiler temporaries, clamped above the 16/32 MiB scoped
    # defaults and below v7x's 64 MiB physical VMEM (v5e/v6e have 128 MiB, so this is safe).
    return int(min(48 << 20, max(est + est // 4 + (4 << 20), 24 << 20)))


def linear_equivariant_2to2(x, weight, bias_all, bias_diag, normalize=False, out_dtype=None):
    """x: (B, C, N, N); weight: (O, 15*C, 1, 1); bias_all: (O,); bias_diag: (O, 1).
    Returns (B, O, N, N) — same forward as the PyTorch LinearEquivariant2to2."""
    B, C, N, N2 = x.shape
    assert N == N2, "input must be (B, C, N, N)"
    O = weight.shape[0]
    assert weight.shape == (O, 15 * C, 1, 1)
    out_dtype = x.dtype if out_dtype is None else out_dtype
    f32 = jnp.float32
    NN = N * N
    K = 5 * C + 1

    # ---- cheap per-channel reductions, accumulated in f32 (x itself is NOT upcast) ----
    diag = jnp.diagonal(x, axis1=2, axis2=3).astype(f32)      # (B, C, N)
    rows = jnp.sum(x, axis=3, dtype=f32)                      # (B, C, N)  sum over j
    cols = jnp.sum(x, axis=2, dtype=f32)                      # (B, C, N)  sum over i
    sdiag = jnp.sum(diag, axis=2)                             # (B, C)
    total = jnp.sum(rows, axis=2)                             # (B, C)
    V = jnp.concatenate([
        diag, rows, cols,
        jnp.broadcast_to(sdiag[:, :, None], (B, C, N)),
        jnp.broadcast_to(total[:, :, None], (B, C, N)),
        jnp.ones((B, 1, N), f32),
    ], axis=1)                                                # (B, K, N)  -- no block-diag zeros

    # ---- main inputs in model dtype: free reshape of x + one transposed copy ----
    x_flat = x.reshape(B, C, NN)
    xt_flat = jnp.swapaxes(x, 2, 3).reshape(B, C, NN)

    # ---- selection matrix E, hoisted to the wrapper (built with iota/mod, no N-way concat) ----
    kk = lax.broadcasted_iota(jnp.int32, (N, NN), 0)
    pp = lax.broadcasted_iota(jnp.int32, (N, NN), 1)
    i_of_p = pp // N
    j_of_p = pp % N
    e_row = (i_of_p == kk).astype(f32)                        # depends on i
    e_col = (j_of_p == kk).astype(f32)                        # depends on j
    e_diag = jnp.logical_and(i_of_p == kk, j_of_p == kk).astype(f32)
    E = jnp.concatenate([e_row, e_col, e_diag], axis=0)       # (3N, NN)

    # ---- fold basis order, normalization and both biases into stacked weights ----
    w = weight.reshape(O, 15, C).astype(f32)                  # w[:, k] multiplies op_{k+1}
    n1 = (1.0 / N) if normalize else 1.0
    n2 = (1.0 / (N * N)) if normalize else 1.0
    ba = bias_all.astype(f32).reshape(O, 1)
    bd = bias_diag.astype(f32).reshape(O, 1)
    zc = jnp.zeros((O, C), f32)
    z1 = jnp.zeros((O, 1), f32)
    w_id = w[:, 9]                                            # op10: x
    w_t = w[:, 10]                                            # op11: x^T
    # V column order: [d, r, q, sd, t, 1]
    w_ri = jnp.concatenate([w[:, 11], w[:, 6] * n1, w[:, 5] * n1, zc, zc, z1], axis=1)
    w_rj = jnp.concatenate([w[:, 12], w[:, 8] * n1, w[:, 7] * n1,
                            w[:, 13] * n1, w[:, 14] * n2, ba], axis=1)
    w_di = jnp.concatenate([w[:, 0], w[:, 2] * n1, w[:, 3] * n1,
                            w[:, 1] * n1, w[:, 4] * n2, bd], axis=1)
    w_g = jnp.concatenate([w_ri, w_rj, w_di], axis=0)         # (3O, K)

    # ---- block size / VMEM accounting (double-buffered streams + resident E/weights/temps) ----
    x_isz = jnp.dtype(x.dtype).itemsize
    o_isz = jnp.dtype(out_dtype).itemsize
    per_batch = 2 * C * NN * x_isz + K * N * 4 + O * NN * o_isz
    tb = _pick_batch_block(B, per_batch, budget_bytes=16 << 20)
    resident = (2 * (3 * N * NN + 2 * O * C + 3 * O * K) * 4   # E + weights (x2 buffers)
                + (2 * O * NN + 4 * O * N) * 4)                # in-kernel f32 temporaries
    vmem_limit = _vmem_limit_bytes(tb, per_batch, resident)

    # NOTE: O/C/K are intentionally left unpadded — padding O would require an extra HBM pass to
    # slice the output back, which costs more than the sublane-masked stores it would remove.
    kernel = functools.partial(_lin_eq_2to2_kernel, out_features=O)
    out_flat = pl.pallas_call(
        kernel,
        out_shape=jax.ShapeDtypeStruct((B, O, NN), out_dtype),
        grid=(B // tb,),
        in_specs=[
            pl.BlockSpec((tb, C, NN), lambda i: (i, 0, 0)),
            pl.BlockSpec((tb, C, NN), lambda i: (i, 0, 0)),
            pl.BlockSpec((tb, K, N), lambda i: (i, 0, 0)),
            pl.BlockSpec((3 * N, NN), lambda i: (0, 0)),      # E: constant index -> DMA'd once
            pl.BlockSpec((O, C), lambda i: (0, 0)),
            pl.BlockSpec((O, C), lambda i: (0, 0)),
            pl.BlockSpec((3 * O, K), lambda i: (0, 0)),
        ],
        out_specs=pl.BlockSpec((tb, O, NN), lambda i: (i, 0, 0)),
        compiler_params=pltpu.CompilerParams(
            dimension_semantics=("parallel",),
            vmem_limit_bytes=vmem_limit),
    )(x_flat, xt_flat, V, E, w_id, w_t, w_g)

    return out_flat.reshape(B, O, N, N)


def _reference(x, weight, bias_all, bias_diag, normalize=False):
    """Plain-JAX reference: materialize the 15-element basis and apply the 1x1 conv."""
    B, C, N, _ = x.shape
    O = weight.shape[0]
    eye = jnp.eye(N, dtype=x.dtype)

    diag_part = jnp.diagonal(x, axis1=2, axis2=3)             # (B, C, N)
    sum_diag = jnp.sum(diag_part, axis=2, keepdims=True)      # (B, C, 1)
    sum_rows = jnp.sum(x, axis=3)                             # (B, C, N)
    sum_cols = jnp.sum(x, axis=2)                             # (B, C, N)
    sum_all = jnp.sum(sum_rows, axis=2)                       # (B, C)

    def diag_embed(v):                                        # (B,C,N) -> (B,C,N,N)
        return v[..., :, None] * eye

    op1 = diag_embed(diag_part)
    op2 = diag_embed(jnp.broadcast_to(sum_diag, (B, C, N)))
    op3 = diag_embed(sum_rows)
    op4 = diag_embed(sum_cols)
    op5 = diag_embed(jnp.broadcast_to(sum_all[:, :, None], (B, C, N)))
    op6 = jnp.broadcast_to(sum_cols[:, :, :, None], (B, C, N, N))
    op7 = jnp.broadcast_to(sum_rows[:, :, :, None], (B, C, N, N))
    op8 = jnp.broadcast_to(sum_cols[:, :, None, :], (B, C, N, N))
    op9 = jnp.broadcast_to(sum_rows[:, :, None, :], (B, C, N, N))
    op10 = x
    op11 = jnp.swapaxes(x, 2, 3)
    op12 = jnp.broadcast_to(diag_part[:, :, :, None], (B, C, N, N))
    op13 = jnp.broadcast_to(diag_part[:, :, None, :], (B, C, N, N))
    op14 = jnp.broadcast_to(sum_diag[:, :, :, None], (B, C, N, N))
    op15 = jnp.broadcast_to(sum_all[:, :, None, None], (B, C, N, N))
    ops = [op1, op2, op3, op4, op5, op6, op7, op8,
           op9, op10, op11, op12, op13, op14, op15]
    if normalize:
        scale = [1, 1 / N, 1 / N, 1 / N, 1 / N ** 2, 1 / N, 1 / N, 1 / N,
                 1 / N, 1, 1, 1, 1, 1 / N, 1 / N ** 2]
        ops = [o * s for o, s in zip(ops, scale)]
    basis = jnp.concatenate(ops, axis=1)                      # (B, 15C, N, N)
    wmat = weight.reshape(O, 15 * C)
    out = jnp.einsum('bkij,ok->boij', basis, wmat,
                     precision=jax.lax.Precision.HIGHEST)
    out = out + bias_all[None, :, None, None]
    out = out + bias_diag.reshape(1, O, 1, 1) * eye[None, None]
    return out


if __name__ == "__main__":
    key = jax.random.PRNGKey(0)
    configs = [
        dict(B=2, C=4, O=6, N=16),   # primary test shape
        dict(B=4, C=3, O=5, N=8),    # exercises tb > 1 and a multi-step grid
    ]
    for cfg in configs:
        B, C, O, N = cfg["B"], cfg["C"], cfg["O"], cfg["N"]
        key, kx, kw, kba, kbd = jax.random.split(key, 5)

        x = jax.random.normal(kx, (B, C, N, N), dtype=jnp.float32)

        # Deterministic init matching reset_parameters():
        #   kaiming_uniform_(a=sqrt(5)) on (O, 15C, 1, 1) -> U(-1/sqrt(15C), 1/sqrt(15C))
        fan_in = 15 * C
        bound = 1.0 / math.sqrt(fan_in)
        weight = jax.random.uniform(kw, (O, 15 * C, 1, 1), jnp.float32, -bound, bound)
        bias_all = jax.random.uniform(kba, (O,), jnp.float32, -bound, bound)
        bias_diag = jax.random.uniform(kbd, (O, 1), jnp.float32, -bound, bound)

        for normalize in (False, True):
            out = jax.block_until_ready(
                linear_equivariant_2to2(x, weight, bias_all, bias_diag, normalize))
            ref = _reference(x, weight, bias_all, bias_diag, normalize)
            assert out.shape == (B, O, N, N), out.shape
            err = float(jnp.max(jnp.abs(out - ref)))
            assert jnp.allclose(out, ref, rtol=1e-3, atol=1e-3), (cfg, normalize, err)

    print("KERNEL_OK")
</pallas_src>

<mosaic_0001>
module attributes {stable_mosaic.version = 11 : i64} {
  func.func @_lin_eq_2to2_kernel(%arg0: i32, %arg1: memref<1x4x256xf32, #tpu.memory_space<vmem>>, %arg2: memref<1x4x256xf32, #tpu.memory_space<vmem>>, %arg3: memref<1x21x16xf32, #tpu.memory_space<vmem>>, %arg4: memref<48x256xf32, #tpu.memory_space<vmem>>, %arg5: memref<6x4xf32, #tpu.memory_space<vmem>>, %arg6: memref<6x4xf32, #tpu.memory_space<vmem>>, %arg7: memref<18x21xf32, #tpu.memory_space<vmem>>, %arg8: memref<1x6x256xf32, #tpu.memory_space<vmem>>) attributes {dimension_semantics = [#tpu.dimension_semantics<parallel>], iteration_bounds = array<i64: 2>, scalar_prefetch = 0 : i64, scratch_operands = 0 : i64, tpu.core_type = #tpu.core_type<tc>, window_params = [{transform_indices = @transform_0, window_bounds = array<i64: 1, 4, 256>}, {transform_indices = @transform_1, window_bounds = array<i64: 1, 4, 256>}, {transform_indices = @transform_2, window_bounds = array<i64: 1, 21, 16>}, {pipeline_mode = #tpu.pipeline_mode<synchronous>, transform_indices = @transform_3, window_bounds = array<i64: 48, 256>}, {pipeline_mode = #tpu.pipeline_mode<synchronous>, transform_indices = @transform_4, window_bounds = array<i64: 6, 4>}, {pipeline_mode = #tpu.pipeline_mode<synchronous>, transform_indices = @transform_5, window_bounds = array<i64: 6, 4>}, {pipeline_mode = #tpu.pipeline_mode<synchronous>, transform_indices = @transform_6, window_bounds = array<i64: 18, 21>}, {transform_indices = @transform_7, window_bounds = array<i64: 1, 6, 256>}]} {
    %c0 = arith.constant 0 : index
    %c0_0 = arith.constant 0 : index
    %0 = vector.load %arg5[%c0, %c0_0] : memref<6x4xf32, #tpu.memory_space<vmem>>, vector<6x4xf32>
    %c0_1 = arith.constant 0 : index
    %c0_2 = arith.constant 0 : index
    %1 = vector.load %arg6[%c0_1, %c0_2] : memref<6x4xf32, #tpu.memory_space<vmem>>, vector<6x4xf32>
    %c0_3 = arith.constant 0 : index
    %c0_4 = arith.constant 0 : index
    %2 = vector.load %arg7[%c0_3, %c0_4] : memref<18x21xf32, #tpu.memory_space<vmem>>, vector<18x21xf32>
    %c0_5 = arith.constant 0 : index
    %c0_6 = arith.constant 0 : index
    %3 = vector.load %arg4[%c0_5, %c0_6] : memref<48x256xf32, #tpu.memory_space<vmem>>, vector<48x256xf32>
    %c0_i32 = arith.constant 0 : i32
    %4 = arith.index_cast %c0_i32 : i32 to index
    %c0_7 = arith.constant 0 : index
    %c0_8 = arith.constant 0 : index
    %5 = vector.load %arg1[%4, %c0_7, %c0_8] : memref<1x4x256xf32, #tpu.memory_space<vmem>>, vector<1x4x256xf32>
    %6 = vector.shape_cast %5 : vector<1x4x256xf32> to vector<4x256xf32>
    %7 = arith.index_cast %c0_i32 : i32 to index
    %c0_9 = arith.constant 0 : index
    %c0_10 = arith.constant 0 : index
    %8 = vector.load %arg2[%7, %c0_9, %c0_10] : memref<1x4x256xf32, #tpu.memory_space<vmem>>, vector<1x4x256xf32>
    %9 = vector.shape_cast %8 : vector<1x4x256xf32> to vector<4x256xf32>
    %10 = arith.index_cast %c0_i32 : i32 to index
    %c0_11 = arith.constant 0 : index
    %c0_12 = arith.constant 0 : index
    %11 = vector.load %arg3[%10, %c0_11, %c0_12] : memref<1x21x16xf32, #tpu.memory_space<vmem>>, vector<1x21x16xf32>
    %12 = vector.shape_cast %11 : vector<1x21x16xf32> to vector<21x16xf32>
    %cst = arith.constant dense<0.000000e+00> : vector<6x256xf32>
    %13 = tpu.matmul %0, %6, %cst {dimension_numbers = #tpu.dot_dimension_numbers<[1], [0], [0], [1], [0, 0, 1, 1], [], []>} : vector<6x4xf32>, vector<4x256xf32>, vector<6x256xf32> -> vector<6x256xf32>
    %cst_13 = arith.constant dense<0.000000e+00> : vector<6x256xf32>
    %14 = tpu.matmul %1, %9, %cst_13 {dimension_numbers = #tpu.dot_dimension_numbers<[1], [0], [0], [1], [0, 0, 1, 1], [], []>} : vector<6x4xf32>, vector<4x256xf32>, vector<6x256xf32> -> vector<6x256xf32>
    %15 = arith.addf %13, %14 : vector<6x256xf32>
    %cst_14 = arith.constant dense<0.000000e+00> : vector<18x16xf32>
    %16 = tpu.matmul %2, %12, %cst_14 {dimension_numbers = #tpu.dot_dimension_numbers<[1], [0], [0], [1], [0, 0, 1, 1], [], []>} : vector<18x21xf32>, vector<21x16xf32>, vector<18x16xf32> -> vector<18x16xf32>
    %17 = vector.extract_strided_slice %16 {offsets = [0, 0], sizes = [6, 16], strides = [1, 1]} : vector<18x16xf32> to vector<6x16xf32>
    %18 = vector.extract_strided_slice %16 {offsets = [6, 0], sizes = [6, 16], strides = [1, 1]} : vector<18x16xf32> to vector<6x16xf32>
    %19 = vector.extract_strided_slice %16 {offsets = [12, 0], sizes = [6, 16], strides = [1, 1]} : vector<18x16xf32> to vector<6x16xf32>
    %20 = tpu.concatenate %17, %18, %19 in 1 : vector<6x16xf32>, vector<6x16xf32>, vector<6x16xf32> -> vector<6x48xf32>
    %cst_15 = arith.constant dense<0.000000e+00> : vector<6x256xf32>
    %21 = tpu.matmul %20, %3, %cst_15 {dimension_numbers = #tpu.dot_dimension_numbers<[1], [0], [0], [1], [0, 0, 1, 1], [], []>} : vector<6x48xf32>, vector<48x256xf32>, vector<6x256xf32> -> vector<6x256xf32>
    %22 = arith.addf %15, %21 : vector<6x256xf32>
    %23 = arith.index_cast %c0_i32 : i32 to index
    %c0_16 = arith.constant 0 : index
    %c0_17 = arith.constant 0 : index
    %24 = vector.load %arg8[%23, %c0_16, %c0_17] : memref<1x6x256xf32, #tpu.memory_space<vmem>>, vector<1x6x256xf32>
    %25 = vector.shape_cast %24 : vector<1x6x256xf32> to vector<6x256xf32>
    %26 = vector.shape_cast %22 : vector<6x256xf32> to vector<1x6x256xf32>
    tpu.vector_store %arg8[%23, %c0_16, %c0_17], %26 {strides = array<i32>} : memref<1x6x256xf32, #tpu.memory_space<vmem>>, vector<1x6x256xf32>,
    %c1_i32 = arith.constant 1 : i32
    return
  }
  func.func @transform_0(%arg0: i32) -> (i32, i32, i32) {
    %c0_i32 = arith.constant 0 : i32
    %c0_i32_0 = arith.constant 0 : i32
    %c0_i32_1 = arith.constant 0 : i32
    return %arg0, %c0_i32, %c0_i32_0 : i32, i32, i32
  }
  func.func @transform_1(%arg0: i32) -> (i32, i32, i32) {
    %c0_i32 = arith.constant 0 : i32
    %c0_i32_0 = arith.constant 0 : i32
    %c0_i32_1 = arith.constant 0 : i32
    return %arg0, %c0_i32, %c0_i32_0 : i32, i32, i32
  }
  func.func @transform_2(%arg0: i32) -> (i32, i32, i32) {
    %c0_i32 = arith.constant 0 : i32
    %c0_i32_0 = arith.constant 0 : i32
    %c0_i32_1 = arith.constant 0 : i32
    return %arg0, %c0_i32, %c0_i32_0 : i32, i32, i32
  }
  func.func @transform_3(%arg0: i32) -> (i32, i32) {
    %c0_i32 = arith.constant 0 : i32
    %c0_i32_0 = arith.constant 0 : i32
    %c0_i32_1 = arith.constant 0 : i32
    return %c0_i32, %c0_i32_0 : i32, i32
  }
  func.func @transform_4(%arg0: i32) -> (i32, i32) {
    %c0_i32 = arith.constant 0 : i32
    %c0_i32_0 = arith.constant 0 : i32
    %c0_i32_1 = arith.constant 0 : i32
    return %c0_i32, %c0_i32_0 : i32, i32
  }
  func.func @transform_5(%arg0: i32) -> (i32, i32) {
    %c0_i32 = arith.constant 0 : i32
    %c0_i32_0 = arith.constant 0 : i32
    %c0_i32_1 = arith.constant 0 : i32
    return %c0_i32, %c0_i32_0 : i32, i32
  }
  func.func @transform_6(%arg0: i32) -> (i32, i32) {
    %c0_i32 = arith.constant 0 : i32
    %c0_i32_0 = arith.constant 0 : i32
    %c0_i32_1 = arith.constant 0 : i32
    return %c0_i32, %c0_i32_0 : i32, i32
  }
  func.func @transform_7(%arg0: i32) -> (i32, i32, i32) {
    %c0_i32 = arith.constant 0 : i32
    %c0_i32_0 = arith.constant 0 : i32
    %c0_i32_1 = arith.constant 0 : i32
    return %arg0, %c0_i32, %c0_i32_0 : i32, i32, i32
  }
}

</mosaic_0001>

<llo_original>
// kernel: tpu_custom_call.1
$region0: #{tpu_custom_call.1}
  #allocation0 [shape = 'u32[]', space=smem, size = 0x4, offset = 0x4, fixed_abs, tag = 'smem constant byte address 0x4 - core index']
  #allocation1 [shape = 'u32[144,128]{1,0:T(1,128)}', space=vmem, size = 0x12000, scoped, tag = 'internal scratch']
  %s0 = inlined_call_operand.hbm [shape: f32[2,4,256], index: 0, kind: input, shape index: {}]
  %s1 = inlined_call_operand.hbm [shape: f32[2,4,256], index: 1, kind: input, shape index: {}]
  %s2 = inlined_call_operand.vmem [shape: f32[2,21,16], index: 2, kind: input, shape index: {}]
  %s3 = inlined_call_operand.vmem [shape: f32[48,256], index: 3, kind: input, shape index: {}]
  %s4 = inlined_call_operand.vmem [shape: f32[6,4], index: 4, kind: input, shape index: {}]
  %s5 = inlined_call_operand.vmem [shape: f32[6,4], index: 5, kind: input, shape index: {}]
  %s6 = inlined_call_operand.vmem [shape: f32[18,21], index: 6, kind: input, shape index: {}]
  %s7 = inlined_call_operand.vmem [shape: f32[2,6,256], index: 7, kind: output, shape index: {}]
  %s8 = sld [smem:[#allocation0]]
  $region69: #{tpu_custom_call.1} parent=0
    _
  %s10 = ssub.s32 1, %s8
  %s11 = scalar_select 0, %s10, %s8
  $region1: #{tpu_custom_call.1} parent=0
    #allocation2 [shape = 'u8[8192]{0}', space=vmem, size = 0x2000, scoped, tag = 'input window, operand 0']
    #allocation3 [shape = 's32[2]{0}', space=sflag, size = 0x8, scoped, tag = 'scoped memory for tpu_custom_call.1']
    #allocation4 [shape = 'u8[8192]{0}', space=vmem, size = 0x2000, scoped, tag = 'input window, operand 1']
    #allocation5 [shape = 's32[2]{0}', space=sflag, size = 0x8, scoped, tag = 'scoped memory for tpu_custom_call.1']
    %12 = vsyncpa [#allocation3], 0
    %s13 = scalar_lea.sflag [#allocation3], 1
    %14 = vsyncpa %s13, 0
    %15 = vsyncpa [#allocation5], 0
    %s16 = scalar_lea.sflag [#allocation5], 1
    %17 = vsyncpa %s16, 0
    loop: start=0, step=1, limit=4
    $region2: #{tpu_custom_call.1} parent=1 // loop_pre_header
      _
    $region3: #{tpu_custom_call.1} parent=1 // loop_header
      %s19 = sphi 0, %s23
      %p20 = scmp.ge.s32.totalorder %s19, 4
      %s29 = sphi 0, %s31
      %s32 = sphi 0, %s29
      %s33 = sphi 0, %s32
      %s49 = sphi 0, %s33
      %s55 = sphi 0, %s57
      %s58 = sphi 0, %s55
      %s59 = sphi 0, %s58
      %s75 = sphi 0, %s59
      %s81 = sphi 0, %s83
      %s84 = sphi 0, %s81
      %s85 = sphi 0, %s84
      %s101 = sphi 0, %s85
      %s105 = sphi 0, %s105
      %s107 = sphi 0, %s105
      %s108 = sphi 0, %s107
      %s122 = sphi 0, %s108
      %s126 = sphi 0, %s126
      %s128 = sphi 0, %s126
      %s129 = sphi 0, %s128
      %s143 = sphi 0, %s129
      %s147 = sphi 0, %s147
      %s149 = sphi 0, %s147
      %s150 = sphi 0, %s149
      %s164 = sphi 0, %s150
      %s168 = sphi 0, %s168
      %s170 = sphi 0, %s168
      %s171 = sphi 0, %s170
      %s185 = sphi 0, %s171
      %s191 = sphi 0, %s193
      %s194 = sphi 0, %s191
      %s195 = sphi 0, %s194
      %s211 = sphi 0, %s195
    $region4: #{tpu_custom_call.1} parent=1 // loop_header_branch
      %22 = sbr.rel (%p20) target = $region8
    $region5: #{tpu_custom_call.1} parent=1 // loop_body
      %s24 = ssub.s32 %s19, 1
      %s25 = ssub.s32 %s19, 2
      %s26 = sadd.s32 %s19, 1
      %s27 = ssub.s32 %s19, %s26
      %p28 = scmp.eq.s32.totalorder %s27, 0
      %s30 = sadd.s32 %s29, 1
      %s31 = scalar_select %p28, %s29, %s30
      %p34 = pneg %p28
      %p35 = scmp.eq.s32.totalorder %s19, 1
      %p36 = por %p34, %p35
      %p37 = scmp.ne.s32.totalorder %s29, %s32
      %p38 = scmp.eq.s32.totalorder %s19, 0
      %p39 = por %p37, %p38
      %p40 = scmp.ne.s32.totalorder %s29, %s32
      %p41 = scmp.eq.s32.totalorder %s24, 1
      %p42 = por %p40, %p41
      %p43 = scmp.ne.s32.totalorder %s32, %s33
      %p44 = scmp.eq.s32.totalorder %s24, 0
      %p45 = por %p43, %p44
      %p46 = scmp.ne.s32.totalorder %s32, %s33
      %p47 = scmp.eq.s32.totalorder %s25, 1
      %p48 = por %p46, %p47
      %p50 = scmp.ne.s32.totalorder %s33, %s49
      %p51 = scmp.eq.s32.totalorder %s25, 0
      %p52 = por %p50, %p51
      %s53 = ssub.s32 %s19, %s26
      %p54 = scmp.eq.s32.totalorder %s53, 0
      %s56 = sadd.s32 %s55, 1
      %s57 = scalar_select %p54, %s55, %s56
      %p60 = pneg %p54
      %p61 = scmp.eq.s32.totalorder %s19, 1
      %p62 = por %p60, %p61
      %p63 = scmp.ne.s32.totalorder %s55, %s58
      %p64 = scmp.eq.s32.totalorder %s19, 0
      %p65 = por %p63, %p64
      %p66 = scmp.ne.s32.totalorder %s55, %s58
      %p67 = scmp.eq.s32.totalorder %s24, 1
      %p68 = por %p66, %p67
      %p69 = scmp.ne.s32.totalorder %s58, %s59
      %p70 = scmp.eq.s32.totalorder %s24, 0
      %p71 = por %p69, %p70
      %p72 = scmp.ne.s32.totalorder %s58, %s59
      %p73 = scmp.eq.s32.totalorder %s25, 1
      %p74 = por %p72, %p73
      %p76 = scmp.ne.s32.totalorder %s59, %s75
      %p77 = scmp.eq.s32.totalorder %s25, 0
      %p78 = por %p76, %p77
      %s79 = ssub.s32 %s19, %s26
      %p80 = scmp.eq.s32.totalorder %s79, 0
      %s82 = sadd.s32 %s81, 1
      %s83 = scalar_select %p80, %s81, %s82
      %p86 = pneg %p80
      %p87 = scmp.eq.s32.totalorder %s19, 1
      %p88 = por %p86, %p87
      %p89 = scmp.ne.s32.totalorder %s81, %s84
      %p90 = scmp.eq.s32.totalorder %s19, 0
      %p91 = por %p89, %p90
      %p92 = scmp.ne.s32.totalorder %s81, %s84
      %p93 = scmp.eq.s32.totalorder %s24, 1
      %p94 = por %p92, %p93
      %p95 = scmp.ne.s32.totalorder %s84, %s85
      %p96 = scmp.eq.s32.totalorder %s24, 0
      %p97 = por %p95, %p96
      %p98 = scmp.ne.s32.totalorder %s84, %s85
      %p99 = scmp.eq.s32.totalorder %s25, 1
      %p100 = por %p98, %p99
      %p102 = scmp.ne.s32.totalorder %s85, %s101
      %p103 = scmp.eq.s32.totalorder %s25, 0
      %p104 = por %p102, %p103
      %s106 = sadd.s32 %s105, 1
      %p109 = scmp.eq.s32.totalorder %s19, 1
      %p110 = scmp.ne.s32.totalorder %s105, %s107
      %p111 = scmp.eq.s32.totalorder %s19, 0
      %p112 = por %p110, %p111
      %p113 = scmp.ne.s32.totalorder %s105, %s107
      %p114 = scmp.eq.s32.totalorder %s24, 1
      %p115 = por %p113, %p114
      %p116 = scmp.ne.s32.totalorder %s107, %s108
      %p117 = scmp.eq.s32.totalorder %s24, 0
      %p118 = por %p116, %p117
      %p119 = scmp.ne.s32.totalorder %s107, %s108
      %p120 = scmp.eq.s32.totalorder %s25, 1
      %p121 = por %p119, %p120
      %p123 = scmp.ne.s32.totalorder %s108, %s122
      %p124 = scmp.eq.s32.totalorder %s25, 0
      %p125 = por %p123, %p124
      %s127 = sadd.s32 %s126, 1
      %p130 = scmp.eq.s32.totalorder %s19, 1
      %p131 = scmp.ne.s32.totalorder %s126, %s128
      %p132 = scmp.eq.s32.totalorder %s19, 0
      %p133 = por %p131, %p132
      %p134 = scmp.ne.s32.totalorder %s126, %s128
      %p135 = scmp.eq.s32.totalorder %s24, 1
      %p136 = por %p134, %p135
      %p137 = scmp.ne.s32.totalorder %s128, %s129
      %p138 = scmp.eq.s32.totalorder %s24, 0
      %p139 = por %p137, %p138
      %p140 = scmp.ne.s32.totalorder %s128, %s129
      %p141 = scmp.eq.s32.totalorder %s25, 1
      %p142 = por %p140, %p141
      %p144 = scmp.ne.s32.totalorder %s129, %s143
      %p145 = scmp.eq.s32.totalorder %s25, 0
      %p146 = por %p144, %p145
      %s148 = sadd.s32 %s147, 1
      %p151 = scmp.eq.s32.totalorder %s19, 1
      %p152 = scmp.ne.s32.totalorder %s147, %s149
      %p153 = scmp.eq.s32.totalorder %s19, 0
      %p154 = por %p152, %p153
      %p155 = scmp.ne.s32.totalorder %s147, %s149
      %p156 = scmp.eq.s32.totalorder %s24, 1
      %p157 = por %p155, %p156
      %p158 = scmp.ne.s32.totalorder %s149, %s150
      %p159 = scmp.eq.s32.totalorder %s24, 0
      %p160 = por %p158, %p159
      %p161 = scmp.ne.s32.totalorder %s149, %s150
      %p162 = scmp.eq.s32.totalorder %s25, 1
      %p163 = por %p161, %p162
      %p165 = scmp.ne.s32.totalorder %s150, %s164
      %p166 = scmp.eq.s32.totalorder %s25, 0
      %p167 = por %p165, %p166
      %s169 = sadd.s32 %s168, 1
      %p172 = scmp.eq.s32.totalorder %s19, 1
      %p173 = scmp.ne.s32.totalorder %s168, %s170
      %p174 = scmp.eq.s32.totalorder %s19, 0
      %p175 = por %p173, %p174
      %p176 = scmp.ne.s32.totalorder %s168, %s170
      %p177 = scmp.eq.s32.totalorder %s24, 1
      %p178 = por %p176, %p177
      %p179 = scmp.ne.s32.totalorder %s170, %s171
      %p180 = scmp.eq.s32.totalorder %s24, 0
      %p181 = por %p179, %p180
      %p182 = scmp.ne.s32.totalorder %s170, %s171
      %p183 = scmp.eq.s32.totalorder %s25, 1
      %p184 = por %p182, %p183
      %p186 = scmp.ne.s32.totalorder %s171, %s185
      %p187 = scmp.eq.s32.totalorder %s25, 0
      %p188 = por %p186, %p187
      %s189 = ssub.s32 %s19, %s26
      %p190 = scmp.eq.s32.totalorder %s189, 0
      %s192 = sadd.s32 %s191, 1
      %s193 = scalar_select %p190, %s191, %s192
      %p196 = pneg %p190
      %p197 = scmp.eq.s32.totalorder %s19, 1
      %p198 = por %p196, %p197
      %p199 = scmp.ne.s32.totalorder %s191, %s194
      %p200 = scmp.eq.s32.totalorder %s19, 0
      %p201 = por %p199, %p200
      %p202 = scmp.ne.s32.totalorder %s191, %s194
      %p203 = scmp.eq.s32.totalorder %s24, 1
      %p204 = por %p202, %p203
      %p205 = scmp.ne.s32.totalorder %s194, %s195
      %p206 = scmp.eq.s32.totalorder %s24, 0
      %p207 = por %p205, %p206
      %p208 = scmp.ne.s32.totalorder %s194, %s195
      %p209 = scmp.eq.s32.totalorder %s25, 1
      %p210 = por %p208, %p209
      %p212 = scmp.ne.s32.totalorder %s195, %s211
      %p213 = scmp.eq.s32.totalorder %s25, 0
      %p214 = por %p212, %p213
      %p215 = scmp.le.s32.totalorder 1, %s19
      %p216 = scmp.lt.s32.totalorder %s19, 3
      %p217 = pnand %p215, %p216
      %p218 = pneg %p217
      // Predicated region
      $region9: #{tpu_custom_call.1} parent=5 // pred_check
        _
      $region10: #{tpu_custom_call.1} parent=5 // pred_check_branch
        %220 = sbr.rel (%p217) target = $region12
      $region11: #{tpu_custom_call.1} parent=5 // pred_region
        %s221 = ssub.s32 %s19, 1
        // Predicated region
        $region13: #{tpu_custom_call.1} parent=11 // pred_check
          %p222 = pneg %p118
        $region14: #{tpu_custom_call.1} parent=11 // pred_check_branch
          %224 = sbr.rel (%p222) target = $region16
        $region15: #{tpu_custom_call.1} parent=11 // pred_region
          _
        $region16: #{tpu_custom_call.1} parent=11 // pred_fallthru
          _
        // Predicated region
        $region17: #{tpu_custom_call.1} parent=11 // pred_check
          %p225 = pneg %p139
        $region18: #{tpu_custom_call.1} parent=11 // pred_check_branch
          %227 = sbr.rel (%p225) target = $region20
        $region19: #{tpu_custom_call.1} parent=11 // pred_region
          _
        $region20: #{tpu_custom_call.1} parent=11 // pred_fallthru
          _
        // Predicated region
        $region21: #{tpu_custom_call.1} parent=11 // pred_check
          %p228 = pneg %p160
        $region22: #{tpu_custom_call.1} parent=11 // pred_check_branch
          %230 = sbr.rel (%p228) target = $region24
        $region23: #{tpu_custom_call.1} parent=11 // pred_region
          _
        $region24: #{tpu_custom_call.1} parent=11 // pred_fallthru
          _
        // Predicated region
        $region25: #{tpu_custom_call.1} parent=11 // pred_check
          %p231 = pneg %p181
        $region26: #{tpu_custom_call.1} parent=11 // pred_check_branch
          %233 = sbr.rel (%p231) target = $region28
        $region27: #{tpu_custom_call.1} parent=11 // pred_region
          _
        $region28: #{tpu_custom_call.1} parent=11 // pred_fallthru
          _
      $region12: #{tpu_custom_call.1} parent=5 // pred_fallthru
        _
      %p234 = scmp.lt.s32.totalorder %s19, 2
      // Predicated region
      $region29: #{tpu_custom_call.1} parent=5 // pred_check
        %p235 = pneg %p234
      $region30: #{tpu_custom_call.1} parent=5 // pred_check_branch
        %237 = sbr.rel (%p235) target = $region32
      $region31: #{tpu_custom_call.1} parent=5 // pred_region
        // Predicated region
        $region33: #{tpu_custom_call.1} parent=31 // pred_check
          %p238 = pneg %p39
        $region34: #{tpu_custom_call.1} parent=31 // pred_check_branch
          %240 = sbr.rel (%p238) target = $region36
        $region35: #{tpu_custom_call.1} parent=31 // pred_region
          %s241 = sand.u32 %s29, 1
          %s242 = scalar_lea.sflag [#allocation3], %s241
          %s243 = sand.u32 %s29, 1
          %s244 = smul.addr %s243, 8
          %s245 = scalar_lea.vmem [#allocation2], %s244
          %s247 = ssub.s32 128, 128
          %248 = vsyncadd %s242, %s247
          %s249 = smul.addr %s19, 2
          %s250 = smul.addr %s249, 64
          %s251 = scalar_lea.hbm %s0, %s250
          %s253 = sshll.u32 %s245, 4
          %s254 = int_to_ptr.vmem [resolvable:$true] %s253
          %256 = dma.hbm_to_vmem [thread:$0]  %s251, 128, %s254, %s242
        $region36: #{tpu_custom_call.1} parent=31 // pred_fallthru
          _
        // Predicated region
        $region37: #{tpu_custom_call.1} parent=31 // pred_check
          %p257 = pneg %p65
        $region38: #{tpu_custom_call.1} parent=31 // pred_check_branch
          %259 = sbr.rel (%p257) target = $region40
        $region39: #{tpu_custom_call.1} parent=31 // pred_region
          %s260 = sand.u32 %s55, 1
          %s261 = scalar_lea.sflag [#allocation5], %s260
          %s262 = sand.u32 %s55, 1
          %s263 = smul.addr %s262, 8
          %s264 = scalar_lea.vmem [#allocation4], %s263
          %s266 = ssub.s32 128, 128
          %267 = vsyncadd %s261, %s266
          %s268 = smul.addr %s19, 2
          %s269 = smul.addr %s268, 64
          %s270 = scalar_lea.hbm %s1, %s269
          %s272 = sshll.u32 %s264, 4
          %s273 = int_to_ptr.vmem [resolvable:$true] %s272
          %275 = dma.hbm_to_vmem [thread:$0]  %s270, 128, %s273, %s261
        $region40: #{tpu_custom_call.1} parent=31 // pred_fallthru
          _
        // Predicated region
        $region41: #{tpu_custom_call.1} parent=31 // pred_check
          %p276 = pneg %p91
        $region42: #{tpu_custom_call.1} parent=31 // pred_check_branch
          %278 = sbr.rel (%p276) target = $region44
        $region43: #{tpu_custom_call.1} parent=31 // pred_region
          %p279 = scmp.lt.s32.totalorder %s19, 1
          %s280 = scalar_select %p279, %s19, 1
          %s281 = smul.addr %s280, 3
          %s282 = smul.addr %s281, 8
          %s283 = scalar_lea.vmem %s2, %s282
        $region44: #{tpu_custom_call.1} parent=31 // pred_fallthru
          _
      $region32: #{tpu_custom_call.1} parent=5 // pred_fallthru
        _
      %p284 = scmp.le.s32.totalorder 1, %s19
      %p285 = scmp.lt.s32.totalorder %s19, 3
      %p286 = pnand %p284, %p285
      %p287 = pneg %p286
      // Predicated region
      $region45: #{tpu_custom_call.1} parent=5 // pred_check
        _
      $region46: #{tpu_custom_call.1} parent=5 // pred_check_branch
        %289 = sbr.rel (%p286) target = $region48
      $region47: #{tpu_custom_call.1} parent=5 // pred_region
        %s290 = ssub.s32 %s19, 1
        %s291 = sand.u32 %s32, 1
        %s292 = scalar_lea.sflag [#allocation3], %s291
        %s293 = sand.u32 %s32, 1
        %s294 = smul.addr %s293, 8
        %s295 = scalar_lea.vmem [#allocation2], %s294
        // Predicated region
        $region49: #{tpu_custom_call.1} parent=47 // pred_check
          %p296 = pneg %p45
        $region50: #{tpu_custom_call.1} parent=47 // pred_check_branch
          %298 = sbr.rel (%p296) target = $region52
        $region51: #{tpu_custom_call.1} parent=47 // pred_region
          %299 = dma.done %s292, 128
        $region52: #{tpu_custom_call.1} parent=47 // pred_fallthru
          _
        %s300 = sand.u32 %s58, 1
        %s301 = scalar_lea.sflag [#allocation5], %s300
        %s302 = sand.u32 %s58, 1
        %s303 = smul.addr %s302, 8
        %s304 = scalar_lea.vmem [#allocation4], %s303
        // Predicated region
        $region53: #{tpu_custom_call.1} parent=47 // pred_check
          %p305 = pneg %p71
        $region54: #{tpu_custom_call.1} parent=47 // pred_check_branch
          %307 = sbr.rel (%p305) target = $region56
        $region55: #{tpu_custom_call.1} parent=47 // pred_region
          %308 = dma.done %s301, 128
        $region56: #{tpu_custom_call.1} parent=47 // pred_fallthru
          _
        %s309 = sand.u32 %s32, 1
        %s310 = scalar_lea.sflag [#allocation3], %s309
        %s311 = sand.u32 %s32, 1
        %s312 = smul.addr %s311, 8
        %s313 = scalar_lea.vmem [#allocation2], %s312
        %p314 = pneg %p45
        %p315 = pneg %p42
        %s316 = sand.u32 %s58, 1
        %s317 = scalar_lea.sflag [#allocation5], %s316
        %s318 = sand.u32 %s58, 1
        %s319 = smul.addr %s318, 8
        %s320 = scalar_lea.vmem [#allocation4], %s319
        %p321 = pneg %p71
        %p322 = pneg %p68
        %p323 = scmp.lt.s32.totalorder %s24, 1
        %s324 = scalar_select %p323, %s24, 1
        %s325 = smul.addr %s324, 3
        %s326 = smul.addr %s325, 8
        %s327 = scalar_lea.vmem %s2, %s326
        %p328 = pneg %p97
        %p329 = pneg %p94
        %p330 = pneg %p118
        %p331 = pneg %p115
        %p332 = pneg %p139
        %p333 = pneg %p136
        %p334 = pneg %p160
        %p335 = pneg %p157
        %p336 = pneg %p181
        %p337 = pneg %p178
        %p338 = pneg %p207
        %p339 = pneg %p204
        %p340 = scmp.lt.s32.totalorder %s24, 1
        %s341 = scalar_select %p340, %s24, 1
        %s342 = smul.addr %s341, 2
        %s343 = smul.addr %s342, 8
        %s344 = scalar_lea.vmem %s7, %s343
        %p345 = scmp.lt.s32.totalorder %s24, 1
        %s346 = scalar_select %p345, %s24, 1
        %s347 = smul.addr %s346, 3
        %s348 = smul.addr %s347, 8
        %s349 = scalar_lea.vmem %s2, %s348
        %p350 = scmp.lt.s32.totalorder %s24, 1
        %s351 = scalar_select %p350, %s24, 1
        %s352 = smul.addr %s351, 2
        %s353 = smul.addr %s352, 8
        %s354 = scalar_lea.vmem %s7, %s353
        %v355 = vld [vmem:[%s4] sm:$0x3f]
        %v356 = vld [vmem:[%s5] sm:$0x3f]
        %v357 = vld [vmem:[%s6] sm:$0xff]
        %v358 = vld [vmem:[%s6 + $0x8] sm:$0xff]
        %v359 = vld [vmem:[%s6 + $0x10] sm:$0x3]
        %v360 = vld [vmem:[%s3] sm:$0xff]
        %v361 = vld [vmem:[%s3 + $0x8] sm:$0xff]
        %v362 = vld [vmem:[%s3 + $0x10] sm:$0xff]
        %v363 = vld [vmem:[%s3 + $0x18] sm:$0xff]
        %v364 = vld [vmem:[%s3 + $0x20] sm:$0xff]
        %v365 = vld [vmem:[%s3 + $0x28] sm:$0xff]
        %v366 = vld [vmem:[%s3 + $0x30] sm:$0xff]
        %v367 = vld [vmem:[%s3 + $0x38] sm:$0xff]
        %v368 = vld [vmem:[%s3 + $0x40] sm:$0xff]
        %v369 = vld [vmem:[%s3 + $0x48] sm:$0xff]
        %v370 = vld [vmem:[%s3 + $0x50] sm:$0xff]
        %v371 = vld [vmem:[%s3 + $0x58] sm:$0xff]
        %v372 = vld [vmem:[%s295] sm:$0xff]
        %v373 = vld [vmem:[%s304] sm:$0xff]
        %v374 = vld [vmem:[%s349] sm:$0xff]
        %v375 = vld [vmem:[%s349 + $0x8] sm:$0xff]
        %v376 = vld [vmem:[%s349 + $0x10] sm:$0x1f]
        %v378 = vcombine.high %v373, %v373
        %vm379 = vcmask 31744
        %v381 = vsel %vm379, %v356, 0
        %vm383 = vcmask 1043456
        %v384 = vsel %vm383, %v373, 0
        %v386 = vsel %vm383, %v378, 0
        %388 = vmatprep.subr.mxu0 %v386
        %389 = vmatpush1.msra.mxu0 %v384
        %390 = vmatprep.subr.mxu0 0.0
        %391 = vmatpush1.msra.mxu0 0.0
        %392 = vmatprep.subr.mxu0 0.0
        %393 = vmatpush1.msra.mxu0 0.0
        %394 = vmatprep.subr.mxu0 0.0
        %395 = vmatpush1.msra.mxu0 0.0
        %396 = vmatprep.subr.mxu0 0.0
        %397 = vmatpush1.msra.mxu0 0.0
        %398 = vmatprep.subr.mxu0 0.0
        %399 = vmatpush1.msra.mxu0 0.0
        %400 = vmatprep.subr.mxu0 0.0
        %401 = vmatpush1.msra.mxu0 0.0
        %402 = vmatprep.subr.mxu0 0.0
        %403 = vmatpush1.msra.mxu0 0.0
        %404 = vmatprep.subr.mxu0 0.0
        %405 = vmatpush1.msra.mxu0 0.0
        %406 = vmatprep.subr.mxu0 0.0
        %407 = vmatpush1.msra.mxu0 0.0
        %408 = vmatprep.subr.mxu0 0.0
        %409 = vmatpush1.msra.mxu0 0.0
        %410 = vmatprep.subr.mxu0 0.0
        %411 = vmatpush1.msra.mxu0 0.0
        %412 = vmatprep.subr.mxu0 0.0
        %413 = vmatpush1.msra.mxu0 0.0
        %414 = vmatprep.subr.mxu0 0.0
        %415 = vmatpush1.msra.mxu0 0.0
        %416 = vmatprep.subr.mxu0 0.0
        %417 = vmatpush1.msra.mxu0 0.0
        %418 = vmatprep.subr.mxu0 0.0
        %419 = vmatpush1.msra.mxu0 0.0
        %420 = vmatprep.subr.mxu0 0.0
        %421 = vmatpush1.msra.mxu0 0.0
        %422 = vmatprep.subr.mxu0 0.0
        %423 = vmatpush1.msra.mxu0 0.0
        %424 = vmatprep.subr.mxu0 0.0
        %425 = vmatpush1.msra.mxu0 0.0
        %426 = vmatprep.subr.mxu0 0.0
        %427 = vmatpush1.msra.mxu0 0.0
        %428 = vmatprep.subr.mxu0 0.0
        %429 = vmatpush1.msra.mxu0 0.0
        %430 = vmatprep.subr.mxu0 0.0
        %431 = vmatpush1.msra.mxu0 0.0
        %432 = vmatprep.subr.mxu0 0.0
        %433 = vmatpush1.msra.mxu0 0.0
        %434 = vmatprep.subr.mxu0 0.0
        %435 = vmatpush1.msra.mxu0 0.0
        %436 = vmatprep.subr.mxu0 0.0
        %437 = vmatpush1.msra.mxu0 0.0
        %438 = vmatprep.subr.mxu0 0.0
        %439 = vmatpush1.msra.mxu0 0.0
        %440 = vmatprep.subr.mxu0 0.0
        %441 = vmatpush1.msra.mxu0 0.0
        %442 = vmatprep.subr.mxu0 0.0
        %443 = vmatpush1.msra.mxu0 0.0
        %444 = vmatprep.subr.mxu0 0.0
        %445 = vmatpush1.msra.mxu0 0.0
        %446 = vmatprep.subr.mxu0 0.0
        %447 = vmatpush1.msra.mxu0 0.0
        %448 = vmatprep.subr.mxu0 0.0
        %449 = vmatpush1.msra.mxu0 0.0
        %450 = vmatprep.subr.mxu0 0.0
        %451 = vmatpush1.msra.mxu0 0.0
        %452 = vmatprep.mubr.f32.mxu0 0.0
        %453 = vmatmul.mubr.f32.gmra.mrb[0].mxu0 %v381
        %v454 = vpop.f32.mrb[0].mxu0
        %v455 = vadd.f32 0.0, %v454
        %v456 = vpop.f32.mrb[0].mxu0
        %v457 = vadd.f32 0.0, %v456
        %458 = vdwg.mxu0
        %v460 = vcombine.high %v372, %v372
        %v462 = vsel %vm379, %v355, 0
        %v464 = vsel %vm383, %v372, 0
        %v466 = vsel %vm383, %v460, 0
        %468 = vmatprep.subr.mxu0 %v466
        %469 = vmatpush1.msra.mxu0 %v464
        %470 = vmatprep.subr.mxu0 0.0
        %471 = vmatpush1.msra.mxu0 0.0
        %472 = vmatprep.subr.mxu0 0.0
        %473 = vmatpush1.msra.mxu0 0.0
        %474 = vmatprep.subr.mxu0 0.0
        %475 = vmatpush1.msra.mxu0 0.0
        %476 = vmatprep.subr.mxu0 0.0
        %477 = vmatpush1.msra.mxu0 0.0
        %478 = vmatprep.subr.mxu0 0.0
        %479 = vmatpush1.msra.mxu0 0.0
        %480 = vmatprep.subr.mxu0 0.0
        %481 = vmatpush1.msra.mxu0 0.0
        %482 = vmatprep.subr.mxu0 0.0
        %483 = vmatpush1.msra.mxu0 0.0
        %484 = vmatprep.subr.mxu0 0.0
        %485 = vmatpush1.msra.mxu0 0.0
        %486 = vmatprep.subr.mxu0 0.0
        %487 = vmatpush1.msra.mxu0 0.0
        %488 = vmatprep.subr.mxu0 0.0
        %489 = vmatpush1.msra.mxu0 0.0
        %490 = vmatprep.subr.mxu0 0.0
        %491 = vmatpush1.msra.mxu0 0.0
        %492 = vmatprep.subr.mxu0 0.0
        %493 = vmatpush1.msra.mxu0 0.0
        %494 = vmatprep.subr.mxu0 0.0
        %495 = vmatpush1.msra.mxu0 0.0
        %496 = vmatprep.subr.mxu0 0.0
        %497 = vmatpush1.msra.mxu0 0.0
        %498 = vmatprep.subr.mxu0 0.0
        %499 = vmatpush1.msra.mxu0 0.0
        %500 = vmatprep.subr.mxu0 0.0
        %501 = vmatpush1.msra.mxu0 0.0
        %502 = vmatprep.subr.mxu0 0.0
        %503 = vmatpush1.msra.mxu0 0.0
        %504 = vmatprep.subr.mxu0 0.0
        %505 = vmatpush1.msra.mxu0 0.0
        %506 = vmatprep.subr.mxu0 0.0
        %507 = vmatpush1.msra.mxu0 0.0
        %508 = vmatprep.subr.mxu0 0.0
        %509 = vmatpush1.msra.mxu0 0.0
        %510 = vmatprep.subr.mxu0 0.0
        %511 = vmatpush1.msra.mxu0 0.0
        %512 = vmatprep.subr.mxu0 0.0
        %513 = vmatpush1.msra.mxu0 0.0
        %514 = vmatprep.subr.mxu0 0.0
        %515 = vmatpush1.msra.mxu0 0.0
        %516 = vmatprep.subr.mxu0 0.0
        %517 = vmatpush1.msra.mxu0 0.0
        %518 = vmatprep.subr.mxu0 0.0
        %519 = vmatpush1.msra.mxu0 0.0
        %520 = vmatprep.subr.mxu0 0.0
        %521 = vmatpush1.msra.mxu0 0.0
        %522 = vmatprep.subr.mxu0 0.0
        %523 = vmatpush1.msra.mxu0 0.0
        %524 = vmatprep.subr.mxu0 0.0
        %525 = vmatpush1.msra.mxu0 0.0
        %526 = vmatprep.subr.mxu0 0.0
        %527 = vmatpush1.msra.mxu0 0.0
        %528 = vmatprep.subr.mxu0 0.0
        %529 = vmatpush1.msra.mxu0 0.0
        %530 = vmatprep.subr.mxu0 0.0
        %531 = vmatpush1.msra.mxu0 0.0
        %532 = vmatprep.mubr.f32.mxu0 0.0
        %533 = vmatmul.mubr.f32.gmra.mrb[0].mxu0 %v462
        %v534 = vpop.f32.mrb[0].mxu0
        %v535 = vadd.f32 %v455, %v534
        %v536 = vpop.f32.mrb[0].mxu0
        %v537 = vadd.f32 %v457, %v536
        %538 = vdwg.mxu0
        %vm539 = vcmask 171008
        %v541 = vsel %vm539, %v357, 0
        %v544 = vsel %vm539, %v358, 0
        %v547 = vsel %vm539, %v359, 0
        %vm549 = vcmask 1044480
        %v551 = vsel %vm549, %v376, 0
        %553 = vmatprep.subr.mxu0 0.0
        %554 = vmatpush1.msra.mxu0 %v374
        %555 = vmatprep.subr.mxu0 0.0
        %556 = vmatpush1.msra.mxu0 %v375
        %557 = vmatprep.subr.mxu0 0.0
        %558 = vmatpush1.msra.mxu0 %v551
        %559 = vmatprep.subr.mxu0 0.0
        %560 = vmatpush1.msra.mxu0 0.0
        %561 = vmatprep.subr.mxu0 0.0
        %562 = vmatpush1.msra.mxu0 0.0
        %563 = vmatprep.subr.mxu0 0.0
        %564 = vmatpush1.msra.mxu0 0.0
        %565 = vmatprep.subr.mxu0 0.0
        %566 = vmatpush1.msra.mxu0 0.0
        %567 = vmatprep.subr.mxu0 0.0
        %568 = vmatpush1.msra.mxu0 0.0
        %569 = vmatprep.subr.mxu0 0.0
        %570 = vmatpush1.msra.mxu0 0.0
        %571 = vmatprep.subr.mxu0 0.0
        %572 = vmatpush1.msra.mxu0 0.0
        %573 = vmatprep.subr.mxu0 0.0
        %574 = vmatpush1.msra.mxu0 0.0
        %575 = vmatprep.subr.mxu0 0.0
        %576 = vmatpush1.msra.mxu0 0.0
        %577 = vmatprep.subr.mxu0 0.0
        %578 = vmatpush1.msra.mxu0 0.0
        %579 = vmatprep.subr.mxu0 0.0
        %580 = vmatpush1.msra.mxu0 0.0
        %581 = vmatprep.subr.mxu0 0.0
        %582 = vmatpush1.msra.mxu0 0.0
        %583 = vmatprep.subr.mxu0 0.0
        %584 = vmatpush1.msra.mxu0 0.0
        %585 = vmatprep.subr.mxu0 0.0
        %586 = vmatpush1.msra.mxu0 0.0
        %587 = vmatprep.subr.mxu0 0.0
        %588 = vmatpush1.msra.mxu0 0.0
        %589 = vmatprep.subr.mxu0 0.0
        %590 = vmatpush1.msra.mxu0 0.0
        %591 = vmatprep.subr.mxu0 0.0
        %592 = vmatpush1.msra.mxu0 0.0
        %593 = vmatprep.subr.mxu0 0.0
        %594 = vmatpush1.msra.mxu0 0.0
        %595 = vmatprep.subr.mxu0 0.0
        %596 = vmatpush1.msra.mxu0 0.0
        %597 = vmatprep.subr.mxu0 0.0
        %598 = vmatpush1.msra.mxu0 0.0
        %599 = vmatprep.subr.mxu0 0.0
        %600 = vmatpush1.msra.mxu0 0.0
        %601 = vmatprep.subr.mxu0 0.0
        %602 = vmatpush1.msra.mxu0 0.0
        %603 = vmatprep.subr.mxu0 0.0
        %604 = vmatpush1.msra.mxu0 0.0
        %605 = vmatprep.subr.mxu0 0.0
        %606 = vmatpush1.msra.mxu0 0.0
        %607 = vmatprep.subr.mxu0 0.0
        %608 = vmatpush1.msra.mxu0 0.0
        %609 = vmatprep.subr.mxu0 0.0
        %610 = vmatpush1.msra.mxu0 0.0
        %611 = vmatprep.subr.mxu0 0.0
        %612 = vmatpush1.msra.mxu0 0.0
        %613 = vmatprep.subr.mxu0 0.0
        %614 = vmatpush1.msra.mxu0 0.0
        %615 = vmatprep.subr.mxu0 0.0
        %616 = vmatpush1.msra.mxu0 0.0
        %617 = vmatprep.mubr.f32.mxu0 0.0
        %618 = vmatmul.mubr.f32.gmra.mrb[0].mxu0 %v541
        %v619 = vpop.f32.mrb[0].mxu0
        %v620 = vadd.f32 0.0, %v619
        %v621 = vpop.f32.mrb[0].mxu0
        %622 = vmatprep.mubr.f32.mxu0 0.0
        %623 = vmatmul.mubr.f32.gmra.mrb[0].mxu0 %v544
        %v624 = vpop.f32.mrb[0].mxu0
        %v625 = vadd.f32 0.0, %v624
        %v626 = vpop.f32.mrb[0].mxu0
        %627 = vmatprep.mubr.f32.mxu0 0.0
        %628 = vmatmul.mubr.f32.gmra.mrb[0].mxu0 %v547
        %v629 = vpop.f32.mrb[0].mxu0
        %v630 = vadd.f32 0.0, %v629
        %v631 = vpop.f32.mrb[0].mxu0
        %632 = vdwg.mxu0
        %vm635 = vcmask 1041408
        %v636 = vrot.slane %v620, 6
        %v637 = vrot.slane %v625, 6
        %v638 = vsel %vm635, %v636, %v637
        %639 = vrot.lane.b32.xlu0 %v638, 16
        %v640 = vpop.permute.xlu0 %639
        %v643 = vrot.slane %v625, 4
        %v644 = vrot.slane %v630, 4
        %v645 = vsel %vm383, %v643, %v644
        %646 = vrot.lane.b32.xlu0 %v645, 32
        %v647 = vpop.permute.xlu0 %646
        %vm649 = vcmask 130048
        %v650 = vsel %vm649, %v620, %v640
        %vm651 = vcmask 261120
        %v652 = vsel %vm651, %v650, %v647
        %vm653 = vcmask 392192
        %v655 = vsel %vm653, %v652, 0
        %657 = vmatprep.subr.mxu0 %v361
        %658 = vmatpush1.msra.mxu0 %v360
        %659 = vmatprep.subr.mxu0 %v363
        %660 = vmatpush1.msra.mxu0 %v362
        %661 = vmatprep.subr.mxu0 %v365
        %662 = vmatpush1.msra.mxu0 %v364
        %663 = vmatprep.subr.mxu0 %v367
        %664 = vmatpush1.msra.mxu0 %v366
        %665 = vmatprep.subr.mxu0 %v369
        %666 = vmatpush1.msra.mxu0 %v368
        %667 = vmatprep.subr.mxu0 %v371
        %668 = vmatpush1.msra.mxu0 %v370
        %669 = vmatprep.subr.mxu0 0.0
        %670 = vmatpush1.msra.mxu0 0.0
        %671 = vmatprep.subr.mxu0 0.0
        %672 = vmatpush1.msra.mxu0 0.0
        %673 = vmatprep.subr.mxu0 0.0
        %674 = vmatpush1.msra.mxu0 0.0
        %675 = vmatprep.subr.mxu0 0.0
        %676 = vmatpush1.msra.mxu0 0.0
        %677 = vmatprep.subr.mxu0 0.0
        %678 = vmatpush1.msra.mxu0 0.0
        %679 = vmatprep.subr.mxu0 0.0
        %680 = vmatpush1.msra.mxu0 0.0
        %681 = vmatprep.subr.mxu0 0.0
        %682 = vmatpush1.msra.mxu0 0.0
        %683 = vmatprep.subr.mxu0 0.0
        %684 = vmatpush1.msra.mxu0 0.0
        %685 = vmatprep.subr.mxu0 0.0
        %686 = vmatpush1.msra.mxu0 0.0
        %687 = vmatprep.subr.mxu0 0.0
        %688 = vmatpush1.msra.mxu0 0.0
        %689 = vmatprep.subr.mxu0 0.0
        %690 = vmatpush1.msra.mxu0 0.0
        %691 = vmatprep.subr.mxu0 0.0
        %692 = vmatpush1.msra.mxu0 0.0
        %693 = vmatprep.subr.mxu0 0.0
        %694 = vmatpush1.msra.mxu0 0.0
        %695 = vmatprep.subr.mxu0 0.0
        %696 = vmatpush1.msra.mxu0 0.0
        %697 = vmatprep.subr.mxu0 0.0
        %698 = vmatpush1.msra.mxu0 0.0
        %699 = vmatprep.subr.mxu0 0.0
        %700 = vmatpush1.msra.mxu0 0.0
        %701 = vmatprep.subr.mxu0 0.0
        %702 = vmatpush1.msra.mxu0 0.0
        %703 = vmatprep.subr.mxu0 0.0
        %704 = vmatpush1.msra.mxu0 0.0
        %705 = vmatprep.subr.mxu0 0.0
        %706 = vmatpush1.msra.mxu0 0.0
        %707 = vmatprep.subr.mxu0 0.0
        %708 = vmatpush1.msra.mxu0 0.0
        %709 = vmatprep.subr.mxu0 0.0
        %710 = vmatpush1.msra.mxu0 0.0
        %711 = vmatprep.subr.mxu0 0.0
        %712 = vmatpush1.msra.mxu0 0.0
        %713 = vmatprep.subr.mxu0 0.0
        %714 = vmatpush1.msra.mxu0 0.0
        %715 = vmatprep.subr.mxu0 0.0
        %716 = vmatpush1.msra.mxu0 0.0
        %717 = vmatprep.subr.mxu0 0.0
        %718 = vmatpush1.msra.mxu0 0.0
        %719 = vmatprep.subr.mxu0 0.0
        %720 = vmatpush1.msra.mxu0 0.0
        %721 = vmatprep.mubr.f32.mxu0 0.0
        %722 = vmatmul.mubr.f32.gmra.mrb[0].mxu0 %v655
        %v723 = vpop.f32.mrb[0].mxu0
        %v724 = vadd.f32 0.0, %v723
        %v725 = vpop.f32.mrb[0].mxu0
        %v726 = vadd.f32 0.0, %v725
        %727 = vdwg.mxu0
        %v728 = vadd.f32 %v535, %v724
        %v729 = vadd.f32 %v537, %v726
        %730 = vst [vmem:[%s354] sm:$0x3f] %v728
        %731 = vst [vmem:[%s354 + $0x8] sm:$0x3f] %v729
        %p732 = scmp.lt.s32.totalorder %s24, 1
        %s733 = scalar_select %p732, %s24, 1
        %s734 = smul.addr %s733, 2
        %s735 = smul.addr %s734, 8
        %s736 = scalar_lea.vmem %s7, %s735
        // Predicated region
        $region57: #{tpu_custom_call.1} parent=47 // pred_check
          %p737 = pneg %p204
        $region58: #{tpu_custom_call.1} parent=47 // pred_check_branch
          %739 = sbr.rel (%p737) target = $region60
        $region59: #{tpu_custom_call.1} parent=47 // pred_region
          _
        $region60: #{tpu_custom_call.1} parent=47 // pred_fallthru
          _
      $region48: #{tpu_custom_call.1} parent=5 // pred_fallthru
        _
      %p740 = scmp.le.s32.totalorder 2, %s19
      // Predicated region
      $region61: #{tpu_custom_call.1} parent=5 // pred_check
        %p741 = pneg %p740
      $region62: #{tpu_custom_call.1} parent=5 // pred_check_branch
        %743 = sbr.rel (%p741) target = $region64
      $region63: #{tpu_custom_call.1} parent=5 // pred_region
        %s744 = ssub.s32 %s19, 2
        // Predicated region
        $region65: #{tpu_custom_call.1} parent=63 // pred_check
          %p745 = pneg %p210
        $region66: #{tpu_custom_call.1} parent=63 // pred_check_branch
          %747 = sbr.rel (%p745) target = $region68
        $region67: #{tpu_custom_call.1} parent=63 // pred_region
          %p748 = scmp.lt.s32.totalorder %s25, 1
          %s749 = scalar_select %p748, %s25, 1
          %s750 = smul.addr %s749, 2
          %s751 = smul.addr %s750, 8
          %s752 = scalar_lea.vmem %s7, %s751
        $region68: #{tpu_custom_call.1} parent=63 // pred_fallthru
          _
      $region64: #{tpu_custom_call.1} parent=5 // pred_fallthru
        _
    $region6: #{tpu_custom_call.1} parent=1 // loop_footer
      %s23 = sadd.s32 1, %s19
    $region7: #{tpu_custom_call.1} parent=1 // loop_footer_branch
      %18 = sbr.rel target = $region3
    $region8: #{tpu_custom_call.1} parent=1 // loop_exit
      _
    %753 = vsyncpa [#allocation3], 1
    %s754 = scalar_lea.sflag [#allocation3], 1
    %755 = vsyncpa %s754, 1
    %756 = vsyncpa [#allocation5], 1
    %s757 = scalar_lea.sflag [#allocation5], 1
    %758 = vsyncpa %s757, 1

</llo_original>
